<compile_context>
chip_gen: v7x
topology: tpu7x:2x2x1
jax: 0.10.0
libtpu: 0.0.40
codegen_flags: <defaults>
</compile_context>

<pallas_src>
import numpy as np
import jax
import jax.numpy as jnp
from jax.experimental import pallas as pl
from jax.experimental.pallas import tpu as pltpu


def _round_up(x: int, m: int) -> int:
    return ((x + m - 1) // m) * m


def _glyph_kernel(ids_ref, table_ref, wct_ref, bias_ref, o_ref):
    # ids_ref:   [TB*S, 1] int32  token ids for this batch tile, row-major (b, s)
    # table_ref: [V, E]    f32    embedding table (grid-invariant)
    # wct_ref:   [2*S, Z]  f32    fused conv weights, [W0 | W1]^T (grid-invariant)
    # bias_ref:  [1, Z]    f32    conv bias (grid-invariant)
    # o_ref:     [TB, Z]   f32    max-pooled conv output for this batch tile (lane-dense)
    V, E = table_ref.shape
    S = E                      # module constraint: sentence_length == embedding_size
    TB, Z = o_ref.shape

    # 1) Embedding gather as an exact one-hot @ table matmul (MXU), batched over all
    #    TB*S tokens of the tile.  ids arrive pre-shaped as a [TB*S, 1] column so no
    #    lane-changing reshape of the int ids is needed in-kernel.
    ids_col = ids_ref[...]                                            # [TB*S, 1] int32
    vocab_iota = jax.lax.broadcasted_iota(jnp.int32, (TB * S, V), 1)  # [TB*S, V]
    onehot = (ids_col == vocab_iota).astype(jnp.float32)              # [TB*S, V]
    x = jnp.dot(onehot, table_ref[...],
                preferred_element_type=jnp.float32)                   # [TB*S, E]

    # 2) Re-layout to conv orientation: xt[b*E + e, s] = x[b*S + s, e].
    #    Both reshapes preserve the lane (last) dim; the swap is a minor-dims transpose.
    xt = jnp.swapaxes(x.reshape(TB, S, E), 1, 2).reshape(TB * E, S)   # [TB*E, S]

    # 3) Fuse both conv taps into a single K=2S matmul.  xt1[r] = xt[r+1] is the tap-1
    #    operand; it is materialized once into the dense fused operand xc, so no
    #    shifted/masked layout feeds the MXU.  The wrap row only contributes to the
    #    masked e == E-1 position, so its value is irrelevant.
    xt1 = jnp.concatenate([xt[1:, :], xt[:1, :]], axis=0)             # [TB*E, S]
    xc = jnp.concatenate([xt, xt1], axis=1)                           # [TB*E, 2S]
    conv = jnp.dot(xc, wct_ref[...],
                   preferred_element_type=jnp.float32)                # [TB*E, Z]

    # 4) Mask the invalid position e == E-1 with -inf, max-pool over the length axis,
    #    then add the bias to the pooled [TB, Z] result (bias is constant along e,
    #    so max(conv + b) == max(conv) + b).
    conv3 = conv.reshape(TB, E, Z)                                    # [TB, E, Z]
    e_iota = jax.lax.broadcasted_iota(jnp.int32, (TB, E, Z), 1)
    masked = jnp.where(e_iota < E - 1, conv3, -jnp.inf)
    pooled = jnp.max(masked, axis=1)                                  # [TB, Z]
    o_ref[...] = pooled + bias_ref[...]                               # [TB, Z]


def glyph_embedding_forward(zixing_ids, emb_table, conv_w, conv_b, *, batch_tile=None):
    """zixing_ids: [B, S] int; emb_table: [V, E]; conv_w: [Z, E, 2]; conv_b: [Z]."""
    B, S = zixing_ids.shape
    V, E = emb_table.shape
    Z = conv_w.shape[0]
    # Implicit constraints of the original PyTorch forward pass.
    assert S == E, "Conv1d treats sentence_length as channels => S must equal embedding_size"
    assert Z == S * E, "final .view(bs, S, E) requires zixing_out_dim == S * E"

    # Batch tile: multiple of 8 sublanes, capped so the per-tile activations stay small.
    if batch_tile is None:
        batch_tile = min(128, _round_up(max(B, 1), 8))
    TB = int(batch_tile)
    B_pad = _round_up(B, TB)
    nb = B_pad // TB

    # Pad the batch (pad ids = 0, a valid row; padded outputs are sliced off below) and
    # pre-shape ids as a [B_pad*S, 1] column so the kernel never reshapes integer data.
    ids_pad = jnp.zeros((B_pad, S), dtype=jnp.int32).at[:B, :].set(
        zixing_ids.astype(jnp.int32))
    ids_col = ids_pad.reshape(B_pad * S, 1)

    # Fuse the two conv taps into one [2S, Z] weight matrix (wrapper-side, free).
    w0 = conv_w[:, :, 0].astype(jnp.float32)                  # [Z, S]
    w1 = conv_w[:, :, 1].astype(jnp.float32)                  # [Z, S]
    wct = jnp.concatenate([w0, w1], axis=1).T                 # [2S, Z]
    bias2 = conv_b.astype(jnp.float32).reshape(1, Z)

    cost = pl.CostEstimate(
        flops=int(B_pad) * (2 * S * V * E + 2 * (2 * S) * E * Z),
        transcendentals=0,
        bytes_accessed=int(B_pad * S * 4 + V * E * 4 + 2 * S * Z * 4 + Z * 4
                           + B_pad * Z * 4),
    )

    pooled = pl.pallas_call(
        _glyph_kernel,
        out_shape=jax.ShapeDtypeStruct((B_pad, Z), jnp.float32),
        grid_spec=pltpu.PrefetchScalarGridSpec(
            num_scalar_prefetch=0,
            grid=(nb,),
            in_specs=[
                pl.BlockSpec((TB * S, 1), lambda i: (i, 0)),   # ids column (per tile)
                pl.BlockSpec((V, E), lambda i: (0, 0)),        # embedding table
                pl.BlockSpec((2 * S, Z), lambda i: (0, 0)),    # fused conv weights
                pl.BlockSpec((1, Z), lambda i: (0, 0)),        # conv bias
            ],
            out_specs=pl.BlockSpec((TB, Z), lambda i: (i, 0)),  # lane-dense [TB, Z]
        ),
        compiler_params=pltpu.CompilerParams(
            dimension_semantics=("parallel",),          # shard batch tiles across cores
            vmem_limit_bytes=32 * 1024 * 1024,          # explicit (raises v5e's 16 MiB default)
        ),
        cost_estimate=cost,
    )(ids_col, emb_table.astype(jnp.float32), wct, bias2)

    # Note: out-of-range ids map to an all-zero embedding row (torch would error).
    return pooled[:B].reshape(B, S, E)


def glyph_embedding_reference(zixing_ids, emb_table, conv_w, conv_b):
    """Pure-JAX reference mirroring the PyTorch forward."""
    B, S = zixing_ids.shape
    E = emb_table.shape[1]
    embed = emb_table[zixing_ids]                                # [B, S, E]
    conv = jax.lax.conv_general_dilated(
        embed, conv_w, window_strides=(1,), padding="VALID",
        dimension_numbers=("NCH", "OIH", "NCH"))                 # [B, Z, E-1]
    conv = conv + conv_b[None, :, None]
    pooled = jnp.max(conv, axis=-1)                              # [B, Z]
    return pooled.reshape(B, S, E)


if __name__ == "__main__":
    # Small shapes consistent with the module's implicit constraints:
    #   sentence_length == embedding_size, zixing_out_dim == S * E.
    B = 2            # batch
    E = 8            # embedding_size
    S = E            # sentence_length (must equal E)
    Z = S * E        # zixing_out_dim = 64
    NUM_ZIXING = 30
    V = NUM_ZIXING + 2   # len(zixing_ids) + 2

    key = jax.random.PRNGKey(0)
    k_emb, k_w, k_b, k_ids = jax.random.split(key, 4)

    emb_table = jax.random.normal(k_emb, (V, E), dtype=jnp.float32)
    conv_w = 0.1 * jax.random.normal(k_w, (Z, E, 2), dtype=jnp.float32)
    conv_b = 0.1 * jax.random.normal(k_b, (Z,), dtype=jnp.float32)
    zixing_ids = jax.random.randint(k_ids, (B, S), 0, V, dtype=jnp.int32)

    out = glyph_embedding_forward(zixing_ids, emb_table, conv_w, conv_b)
    out = jax.block_until_ready(out)

    ref = glyph_embedding_reference(zixing_ids, emb_table, conv_w, conv_b)
    assert out.shape == (B, S, E) and out.dtype == jnp.float32
    assert np.allclose(np.asarray(out), np.asarray(ref), rtol=1e-5, atol=1e-5), \
        "Pallas kernel output mismatch vs reference"

    print("KERNEL_OK")
</pallas_src>

<mosaic_0001>
module attributes {stable_mosaic.version = 11 : i64} {
  func.func @_glyph_kernel(%arg0: i32, %arg1: memref<64x1xi32, #tpu.memory_space<vmem>>, %arg2: memref<32x8xf32, #tpu.memory_space<vmem>>, %arg3: memref<16x64xf32, #tpu.memory_space<vmem>>, %arg4: memref<1x64xf32, #tpu.memory_space<vmem>>, %arg5: memref<8x64xf32, #tpu.memory_space<vmem>>) attributes {dimension_semantics = [#tpu.dimension_semantics<parallel>], iteration_bounds = array<i64: 1>, scalar_prefetch = 0 : i64, scratch_operands = 0 : i64, tpu.core_type = #tpu.core_type<tc>, window_params = [{transform_indices = @transform_0, window_bounds = array<i64: 64, 1>}, {pipeline_mode = #tpu.pipeline_mode<synchronous>, transform_indices = @transform_1, window_bounds = array<i64: 32, 8>}, {pipeline_mode = #tpu.pipeline_mode<synchronous>, transform_indices = @transform_2, window_bounds = array<i64: 16, 64>}, {pipeline_mode = #tpu.pipeline_mode<synchronous>, transform_indices = @transform_3, window_bounds = array<i64: 1, 64>}, {transform_indices = @transform_4, window_bounds = array<i64: 8, 64>}]} {
    %c0 = arith.constant 0 : index
    %c0_0 = arith.constant 0 : index
    %0 = vector.load %arg1[%c0, %c0_0] : memref<64x1xi32, #tpu.memory_space<vmem>>, vector<64x1xi32>
    %1 = tpu.iota {dimensions = array<i32: 1>} : vector<64x32xi32>
    %2 = vector.broadcast %0 : vector<64x1xi32> to vector<64x32xi32>
    %3 = arith.cmpi eq, %2, %1 : vector<64x32xi32>
    %4 = arith.extui %3 : vector<64x32xi1> to vector<64x32xi32>
    %5 = arith.sitofp %4 : vector<64x32xi32> to vector<64x32xf32>
    %c0_1 = arith.constant 0 : index
    %c0_2 = arith.constant 0 : index
    %6 = vector.load %arg2[%c0_1, %c0_2] : memref<32x8xf32, #tpu.memory_space<vmem>>, vector<32x8xf32>
    %cst = arith.constant dense<0.000000e+00> : vector<64x8xf32>
    %7 = tpu.matmul %5, %6, %cst {dimension_numbers = #tpu.dot_dimension_numbers<[1], [0], [0], [1], [0, 0, 1, 1], [], []>} : vector<64x32xf32>, vector<32x8xf32>, vector<64x8xf32> -> vector<64x8xf32>
    %8 = vector.shape_cast %7 : vector<64x8xf32> to vector<8x8x8xf32>
    %9 = tpu.transpose %8, [0, 2, 1] : vector<8x8x8xf32> -> vector<8x8x8xf32>
    %10 = vector.shape_cast %9 : vector<8x8x8xf32> to vector<64x8xf32>
    %11 = vector.extract_strided_slice %10 {offsets = [1, 0], sizes = [63, 8], strides = [1, 1]} : vector<64x8xf32> to vector<63x8xf32>
    %12 = vector.extract_strided_slice %10 {offsets = [0, 0], sizes = [1, 8], strides = [1, 1]} : vector<64x8xf32> to vector<1x8xf32>
    %13 = tpu.concatenate %11, %12 in 0 : vector<63x8xf32>, vector<1x8xf32> -> vector<64x8xf32>
    %14 = tpu.concatenate %10, %13 in 1 : vector<64x8xf32>, vector<64x8xf32> -> vector<64x16xf32>
    %c0_3 = arith.constant 0 : index
    %c0_4 = arith.constant 0 : index
    %15 = vector.load %arg3[%c0_3, %c0_4] : memref<16x64xf32, #tpu.memory_space<vmem>>, vector<16x64xf32>
    %cst_5 = arith.constant dense<0.000000e+00> : vector<64x64xf32>
    %16 = tpu.matmul %14, %15, %cst_5 {dimension_numbers = #tpu.dot_dimension_numbers<[1], [0], [0], [1], [0, 0, 1, 1], [], []>} : vector<64x16xf32>, vector<16x64xf32>, vector<64x64xf32> -> vector<64x64xf32>
    %17 = vector.shape_cast %16 : vector<64x64xf32> to vector<8x8x64xf32>
    %18 = tpu.iota {dimensions = array<i32: 1>} : vector<8x8x64xi32>
    %c7_i32 = arith.constant 7 : i32
    %19 = vector.broadcast %c7_i32 : i32 to vector<8x8x64xi32>
    %20 = arith.cmpi slt, %18, %19 : vector<8x8x64xi32>
    %cst_6 = arith.constant 0xFF800000 : f32
    %21 = vector.broadcast %cst_6 : f32 to vector<8x8x64xf32>
    %22 = arith.select %20, %17, %21 : vector<8x8x64xi1>, vector<8x8x64xf32>
    %cst_7 = arith.constant dense<0xFF800000> : vector<8x64xf32>
    %23 = vector.multi_reduction <maximumf>, %22, %cst_7 [1] : vector<8x8x64xf32> to vector<8x64xf32>
    %c0_8 = arith.constant 0 : index
    %c0_9 = arith.constant 0 : index
    %24 = vector.load %arg4[%c0_8, %c0_9] : memref<1x64xf32, #tpu.memory_space<vmem>>, vector<1x64xf32>
    %25 = vector.broadcast %24 : vector<1x64xf32> to vector<8x64xf32>
    %26 = arith.addf %23, %25 : vector<8x64xf32>
    %c0_10 = arith.constant 0 : index
    %c0_11 = arith.constant 0 : index
    %27 = vector.load %arg5[%c0_10, %c0_11] : memref<8x64xf32, #tpu.memory_space<vmem>>, vector<8x64xf32>
    tpu.vector_store %arg5[%c0_10, %c0_11], %26 {strides = array<i32>} : memref<8x64xf32, #tpu.memory_space<vmem>>, vector<8x64xf32>,
    return
  }
  func.func @transform_0(%arg0: i32) -> (i32, i32) {
    %c0_i32 = arith.constant 0 : i32
    %c0_i32_0 = arith.constant 0 : i32
    return %arg0, %c0_i32 : i32, i32
  }
  func.func @transform_1(%arg0: i32) -> (i32, i32) {
    %c0_i32 = arith.constant 0 : i32
    %c0_i32_0 = arith.constant 0 : i32
    %c0_i32_1 = arith.constant 0 : i32
    return %c0_i32, %c0_i32_0 : i32, i32
  }
  func.func @transform_2(%arg0: i32) -> (i32, i32) {
    %c0_i32 = arith.constant 0 : i32
    %c0_i32_0 = arith.constant 0 : i32
    %c0_i32_1 = arith.constant 0 : i32
    return %c0_i32, %c0_i32_0 : i32, i32
  }
  func.func @transform_3(%arg0: i32) -> (i32, i32) {
    %c0_i32 = arith.constant 0 : i32
    %c0_i32_0 = arith.constant 0 : i32
    %c0_i32_1 = arith.constant 0 : i32
    return %c0_i32, %c0_i32_0 : i32, i32
  }
  func.func @transform_4(%arg0: i32) -> (i32, i32) {
    %c0_i32 = arith.constant 0 : i32
    %c0_i32_0 = arith.constant 0 : i32
    return %arg0, %c0_i32 : i32, i32
  }
}

</mosaic_0001>

<llo_original>
// kernel: tpu_custom_call.1
$region0: #{tpu_custom_call.1}
  #allocation0 [shape = 'u32[]', space=smem, size = 0x4, offset = 0x4, fixed_abs, tag = 'smem constant byte address 0x4 - core index']
  #allocation1 [shape = 'u32[144,128]{1,0:T(1,128)}', space=vmem, size = 0x12000, scoped, tag = 'internal scratch']
  %s0 = inlined_call_operand.vmem [shape: s32[64,1], index: 0, kind: input, shape index: {}]
  %s1 = inlined_call_operand.vmem [shape: f32[32,8], index: 1, kind: input, shape index: {}]
  %s2 = inlined_call_operand.vmem [shape: f32[16,64], index: 2, kind: input, shape index: {}]
  %s3 = inlined_call_operand.vmem [shape: f32[1,64], index: 3, kind: input, shape index: {}]
  %s4 = inlined_call_operand.hbm [shape: f32[8,64], index: 4, kind: output, shape index: {}]
  %s5 = sld [smem:[#allocation0]]
  $region26: #{tpu_custom_call.1} parent=0
    _
  %s7 = ssub.s32 1, %s5
  %s8 = scalar_select 0, %s7, %s5
  $region1: #{tpu_custom_call.1} parent=0
    #allocation2 [shape = 'u8[4096]{0}', space=vmem, size = 0x1000, scoped, tag = 'output window, operand 0, single buffered']
    #allocation3 [shape = 's32[1]{0}', space=sflag, size = 0x4, scoped, tag = 'scoped memory for tpu_custom_call.1']
    %9 = vsyncpa [#allocation3], 0
    // Predicated region
    $region2: #{tpu_custom_call.1} parent=1 // pred_check
      _
    $region3: #{tpu_custom_call.1} parent=1 // pred_check_branch
      %11 = sbr.rel (0) target = $region5
    $region4: #{tpu_custom_call.1} parent=1 // pred_region
      _
    $region5: #{tpu_custom_call.1} parent=1 // pred_fallthru
      _
    // Predicated region
    $region6: #{tpu_custom_call.1} parent=1 // pred_check
      _
    $region7: #{tpu_custom_call.1} parent=1 // pred_check_branch
      %13 = sbr.rel (0) target = $region9
    $region8: #{tpu_custom_call.1} parent=1 // pred_region
      _
    $region9: #{tpu_custom_call.1} parent=1 // pred_fallthru
      _
    // Predicated region
    $region10: #{tpu_custom_call.1} parent=1 // pred_check
      _
    $region11: #{tpu_custom_call.1} parent=1 // pred_check_branch
      %15 = sbr.rel (0) target = $region13
    $region12: #{tpu_custom_call.1} parent=1 // pred_region
      _
    $region13: #{tpu_custom_call.1} parent=1 // pred_fallthru
      _
    // Predicated region
    $region14: #{tpu_custom_call.1} parent=1 // pred_check
      _
    $region15: #{tpu_custom_call.1} parent=1 // pred_check_branch
      %17 = sbr.rel (0) target = $region17
    $region16: #{tpu_custom_call.1} parent=1 // pred_region
      _
    $region17: #{tpu_custom_call.1} parent=1 // pred_fallthru
      _
    %v18 = vld [vmem:[%s0] sm:$0xff]
    %v19 = vld [vmem:[%s0 + $0x8] sm:$0xff]
    %v20 = vld [vmem:[%s0 + $0x10] sm:$0xff]
    %v21 = vld [vmem:[%s0 + $0x18] sm:$0xff]
    %v22 = vld [vmem:[%s0 + $0x20] sm:$0xff]
    %v23 = vld [vmem:[%s0 + $0x28] sm:$0xff]
    %v24 = vld [vmem:[%s0 + $0x30] sm:$0xff]
    %v25 = vld [vmem:[%s0 + $0x38] sm:$0xff]
    %v26 = vlaneseq
    %v27 = vand.u32 %v26, 127
    %28 = vset.pattern.permute.xlu0 0
    %29 = vperm.xlu0 %28, %v18
    %v30 = vpop.permute.xlu0 %29
    %31 = vset.pattern.permute.xlu0 0
    %32 = vperm.xlu0 %31, %v19
    %v33 = vpop.permute.xlu0 %32
    %34 = vset.pattern.permute.xlu0 0
    %35 = vperm.xlu0 %34, %v20
    %v36 = vpop.permute.xlu0 %35
    %37 = vset.pattern.permute.xlu0 0
    %38 = vperm.xlu0 %37, %v21
    %v39 = vpop.permute.xlu0 %38
    %40 = vset.pattern.permute.xlu0 0
    %41 = vperm.xlu0 %40, %v22
    %v42 = vpop.permute.xlu0 %41
    %43 = vset.pattern.permute.xlu0 0
    %44 = vperm.xlu0 %43, %v23
    %v45 = vpop.permute.xlu0 %44
    %46 = vset.pattern.permute.xlu0 0
    %47 = vperm.xlu0 %46, %v24
    %v48 = vpop.permute.xlu0 %47
    %49 = vset.pattern.permute.xlu0 0
    %50 = vperm.xlu0 %49, %v25
    %v51 = vpop.permute.xlu0 %50
    %vm52 = vcmp.eq.s32.totalorder %v30, %v27
    %vm53 = vcmp.eq.s32.totalorder %v33, %v27
    %vm54 = vcmp.eq.s32.totalorder %v36, %v27
    %vm55 = vcmp.eq.s32.totalorder %v39, %v27
    %vm56 = vcmp.eq.s32.totalorder %v42, %v27
    %vm57 = vcmp.eq.s32.totalorder %v45, %v27
    %vm58 = vcmp.eq.s32.totalorder %v48, %v27
    %vm59 = vcmp.eq.s32.totalorder %v51, %v27
    %v60 = vsel %vm52, 1, 0
    %v61 = vsel %vm53, 1, 0
    %v62 = vsel %vm54, 1, 0
    %v63 = vsel %vm55, 1, 0
    %v64 = vsel %vm56, 1, 0
    %v65 = vsel %vm57, 1, 0
    %v66 = vsel %vm58, 1, 0
    %v67 = vsel %vm59, 1, 0
    %v68 = vcvt.s32.f32 %v60
    %v69 = vcvt.s32.f32 %v61
    %v70 = vcvt.s32.f32 %v62
    %v71 = vcvt.s32.f32 %v63
    %v72 = vcvt.s32.f32 %v64
    %v73 = vcvt.s32.f32 %v65
    %v74 = vcvt.s32.f32 %v66
    %v75 = vcvt.s32.f32 %v67
    %v76 = vld [vmem:[%s1] sm:$0xff]
    %v77 = vld [vmem:[%s1 + $0x8] sm:$0xff]
    %v78 = vld [vmem:[%s1 + $0x10] sm:$0xff]
    %v79 = vld [vmem:[%s1 + $0x18] sm:$0xff]
    %vm80 = vcmask 261120
    %v82 = vsel %vm80, %v68, 0
    %v85 = vsel %vm80, %v69, 0
    %v88 = vsel %vm80, %v70, 0
    %v91 = vsel %vm80, %v71, 0
    %v94 = vsel %vm80, %v72, 0
    %v97 = vsel %vm80, %v73, 0
    %v100 = vsel %vm80, %v74, 0
    %v103 = vsel %vm80, %v75, 0
    %105 = vmatprep.subr.mxu0 0.0
    %106 = vmatpush1.msra.mxu0 %v76
    %107 = vmatprep.subr.mxu0 0.0
    %108 = vmatpush1.msra.mxu0 %v77
    %109 = vmatprep.subr.mxu0 0.0
    %110 = vmatpush1.msra.mxu0 %v78
    %111 = vmatprep.subr.mxu0 0.0
    %112 = vmatpush1.msra.mxu0 %v79
    %113 = vmatprep.subr.mxu0 0.0
    %114 = vmatpush1.msra.mxu0 0.0
    %115 = vmatprep.subr.mxu0 0.0
    %116 = vmatpush1.msra.mxu0 0.0
    %117 = vmatprep.subr.mxu0 0.0
    %118 = vmatpush1.msra.mxu0 0.0
    %119 = vmatprep.subr.mxu0 0.0
    %120 = vmatpush1.msra.mxu0 0.0
    %121 = vmatprep.subr.mxu0 0.0
    %122 = vmatpush1.msra.mxu0 0.0
    %123 = vmatprep.subr.mxu0 0.0
    %124 = vmatpush1.msra.mxu0 0.0
    %125 = vmatprep.subr.mxu0 0.0
    %126 = vmatpush1.msra.mxu0 0.0
    %127 = vmatprep.subr.mxu0 0.0
    %128 = vmatpush1.msra.mxu0 0.0
    %129 = vmatprep.subr.mxu0 0.0
    %130 = vmatpush1.msra.mxu0 0.0
    %131 = vmatprep.subr.mxu0 0.0
    %132 = vmatpush1.msra.mxu0 0.0
    %133 = vmatprep.subr.mxu0 0.0
    %134 = vmatpush1.msra.mxu0 0.0
    %135 = vmatprep.subr.mxu0 0.0
    %136 = vmatpush1.msra.mxu0 0.0
    %137 = vmatprep.subr.mxu0 0.0
    %138 = vmatpush1.msra.mxu0 0.0
    %139 = vmatprep.subr.mxu0 0.0
    %140 = vmatpush1.msra.mxu0 0.0
    %141 = vmatprep.subr.mxu0 0.0
    %142 = vmatpush1.msra.mxu0 0.0
    %143 = vmatprep.subr.mxu0 0.0
    %144 = vmatpush1.msra.mxu0 0.0
    %145 = vmatprep.subr.mxu0 0.0
    %146 = vmatpush1.msra.mxu0 0.0
    %147 = vmatprep.subr.mxu0 0.0
    %148 = vmatpush1.msra.mxu0 0.0
    %149 = vmatprep.subr.mxu0 0.0
    %150 = vmatpush1.msra.mxu0 0.0
    %151 = vmatprep.subr.mxu0 0.0
    %152 = vmatpush1.msra.mxu0 0.0
    %153 = vmatprep.subr.mxu0 0.0
    %154 = vmatpush1.msra.mxu0 0.0
    %155 = vmatprep.subr.mxu0 0.0
    %156 = vmatpush1.msra.mxu0 0.0
    %157 = vmatprep.subr.mxu0 0.0
    %158 = vmatpush1.msra.mxu0 0.0
    %159 = vmatprep.subr.mxu0 0.0
    %160 = vmatpush1.msra.mxu0 0.0
    %161 = vmatprep.subr.mxu0 0.0
    %162 = vmatpush1.msra.mxu0 0.0
    %163 = vmatprep.subr.mxu0 0.0
    %164 = vmatpush1.msra.mxu0 0.0
    %165 = vmatprep.subr.mxu0 0.0
    %166 = vmatpush1.msra.mxu0 0.0
    %167 = vmatprep.subr.mxu0 0.0
    %168 = vmatpush1.msra.mxu0 0.0
    %169 = vmatprep.mubr.f32.mxu0 0.0
    %170 = vmatmul.mubr.f32.gmra.mrb[0].mxu0 %v82
    %v171 = vpop.f32.mrb[0].mxu0
    %v172 = vadd.f32 0.0, %v171
    %v173 = vpop.f32.mrb[0].mxu0
    %174 = vmatprep.mubr.f32.mxu0 0.0
    %175 = vmatmul.mubr.f32.gmra.mrb[0].mxu0 %v85
    %v176 = vpop.f32.mrb[0].mxu0
    %v177 = vadd.f32 0.0, %v176
    %v178 = vpop.f32.mrb[0].mxu0
    %179 = vmatprep.mubr.f32.mxu0 0.0
    %180 = vmatmul.mubr.f32.gmra.mrb[0].mxu0 %v88
    %v181 = vpop.f32.mrb[0].mxu0
    %v182 = vadd.f32 0.0, %v181
    %v183 = vpop.f32.mrb[0].mxu0
    %184 = vmatprep.mubr.f32.mxu0 0.0
    %185 = vmatmul.mubr.f32.gmra.mrb[0].mxu0 %v91
    %v186 = vpop.f32.mrb[0].mxu0
    %v187 = vadd.f32 0.0, %v186
    %v188 = vpop.f32.mrb[0].mxu0
    %189 = vmatprep.mubr.f32.mxu0 0.0
    %190 = vmatmul.mubr.f32.gmra.mrb[0].mxu0 %v94
    %v191 = vpop.f32.mrb[0].mxu0
    %v192 = vadd.f32 0.0, %v191
    %v193 = vpop.f32.mrb[0].mxu0
    %194 = vmatprep.mubr.f32.mxu0 0.0
    %195 = vmatmul.mubr.f32.gmra.mrb[0].mxu0 %v97
    %v196 = vpop.f32.mrb[0].mxu0
    %v197 = vadd.f32 0.0, %v196
    %v198 = vpop.f32.mrb[0].mxu0
    %199 = vmatprep.mubr.f32.mxu0 0.0
    %200 = vmatmul.mubr.f32.gmra.mrb[0].mxu0 %v100
    %v201 = vpop.f32.mrb[0].mxu0
    %v202 = vadd.f32 0.0, %v201
    %v203 = vpop.f32.mrb[0].mxu0
    %204 = vmatprep.mubr.f32.mxu0 0.0
    %205 = vmatmul.mubr.f32.gmra.mrb[0].mxu0 %v103
    %v206 = vpop.f32.mrb[0].mxu0
    %v207 = vadd.f32 0.0, %v206
    %v208 = vpop.f32.mrb[0].mxu0
    %209 = vdwg.mxu0
    %210 = vxpose.xlu0.b32.start [1/16] %v172, 128
    %211 = vxpose.xlu0.b32.cont [2/16] 0.0, 128
    %212 = vxpose.xlu0.b32.cont [3/16] 0.0, 128
    %213 = vxpose.xlu0.b32.cont [4/16] 0.0, 128
    %214 = vxpose.xlu0.b32.cont [5/16] 0.0, 128
    %215 = vxpose.xlu0.b32.cont [6/16] 0.0, 128
    %216 = vxpose.xlu0.b32.cont [7/16] 0.0, 128
    %217 = vxpose.xlu0.b32.cont [8/16] 0.0, 128
    %218 = vxpose.xlu0.b32.cont [9/16] 0.0, 128
    %219 = vxpose.xlu0.b32.cont [10/16] 0.0, 128
    %220 = vxpose.xlu0.b32.cont [11/16] 0.0, 128
    %221 = vxpose.xlu0.b32.cont [12/16] 0.0, 128
    %222 = vxpose.xlu0.b32.cont [13/16] 0.0, 128
    %223 = vxpose.xlu0.b32.cont [14/16] 0.0, 128
    %224 = vxpose.xlu0.b32.cont [15/16] 0.0, 128
    %225 = vxpose.xlu0.b32.end [16/16] 0.0, 128
    %v226 = vpop.trf.xlu0
    %v227 = vpop.trf.xlu0
    %v228 = vpop.trf.xlu0
    %v229 = vpop.trf.xlu0
    %v230 = vpop.trf.xlu0
    %v231 = vpop.trf.xlu0
    %v232 = vpop.trf.xlu0
    %v233 = vpop.trf.xlu0
    %v234 = vpop.trf.xlu0
    %v235 = vpop.trf.xlu0
    %v236 = vpop.trf.xlu0
    %v237 = vpop.trf.xlu0
    %v238 = vpop.trf.xlu0
    %v239 = vpop.trf.xlu0
    %v240 = vpop.trf.xlu0
    %v241 = vpop.trf.xlu0
    %242 = vxpose.xlu0.b32.start [1/16] %v177, 128
    %243 = vxpose.xlu0.b32.cont [2/16] 0.0, 128
    %244 = vxpose.xlu0.b32.cont [3/16] 0.0, 128
    %245 = vxpose.xlu0.b32.cont [4/16] 0.0, 128
    %246 = vxpose.xlu0.b32.cont [5/16] 0.0, 128
    %247 = vxpose.xlu0.b32.cont [6/16] 0.0, 128
    %248 = vxpose.xlu0.b32.cont [7/16] 0.0, 128
    %249 = vxpose.xlu0.b32.cont [8/16] 0.0, 128
    %250 = vxpose.xlu0.b32.cont [9/16] 0.0, 128
    %251 = vxpose.xlu0.b32.cont [10/16] 0.0, 128
    %252 = vxpose.xlu0.b32.cont [11/16] 0.0, 128
    %253 = vxpose.xlu0.b32.cont [12/16] 0.0, 128
    %254 = vxpose.xlu0.b32.cont [13/16] 0.0, 128
    %255 = vxpose.xlu0.b32.cont [14/16] 0.0, 128
    %256 = vxpose.xlu0.b32.cont [15/16] 0.0, 128
    %257 = vxpose.xlu0.b32.end [16/16] 0.0, 128
    %v258 = vpop.trf.xlu0
    %v259 = vpop.trf.xlu0
    %v260 = vpop.trf.xlu0
    %v261 = vpop.trf.xlu0
    %v262 = vpop.trf.xlu0
    %v263 = vpop.trf.xlu0
    %v264 = vpop.trf.xlu0
    %v265 = vpop.trf.xlu0
    %v266 = vpop.trf.xlu0
    %v267 = vpop.trf.xlu0
    %v268 = vpop.trf.xlu0
    %v269 = vpop.trf.xlu0
    %v270 = vpop.trf.xlu0
    %v271 = vpop.trf.xlu0
    %v272 = vpop.trf.xlu0
    %v273 = vpop.trf.xlu0
    %274 = vxpose.xlu0.b32.start [1/16] %v182, 128
    %275 = vxpose.xlu0.b32.cont [2/16] 0.0, 128
    %276 = vxpose.xlu0.b32.cont [3/16] 0.0, 128
    %277 = vxpose.xlu0.b32.cont [4/16] 0.0, 128
    %278 = vxpose.xlu0.b32.cont [5/16] 0.0, 128
    %279 = vxpose.xlu0.b32.cont [6/16] 0.0, 128
    %280 = vxpose.xlu0.b32.cont [7/16] 0.0, 128
    %281 = vxpose.xlu0.b32.cont [8/16] 0.0, 128
    %282 = vxpose.xlu0.b32.cont [9/16] 0.0, 128
    %283 = vxpose.xlu0.b32.cont [10/16] 0.0, 128
    %284 = vxpose.xlu0.b32.cont [11/16] 0.0, 128
    %285 = vxpose.xlu0.b32.cont [12/16] 0.0, 128
    %286 = vxpose.xlu0.b32.cont [13/16] 0.0, 128
    %287 = vxpose.xlu0.b32.cont [14/16] 0.0, 128
    %288 = vxpose.xlu0.b32.cont [15/16] 0.0, 128
    %289 = vxpose.xlu0.b32.end [16/16] 0.0, 128
    %v290 = vpop.trf.xlu0
    %v291 = vpop.trf.xlu0
    %v292 = vpop.trf.xlu0
    %v293 = vpop.trf.xlu0
    %v294 = vpop.trf.xlu0
    %v295 = vpop.trf.xlu0
    %v296 = vpop.trf.xlu0
    %v297 = vpop.trf.xlu0
    %v298 = vpop.trf.xlu0
    %v299 = vpop.trf.xlu0
    %v300 = vpop.trf.xlu0
    %v301 = vpop.trf.xlu0
    %v302 = vpop.trf.xlu0
    %v303 = vpop.trf.xlu0
    %v304 = vpop.trf.xlu0
    %v305 = vpop.trf.xlu0
    %306 = vxpose.xlu0.b32.start [1/16] %v187, 128
    %307 = vxpose.xlu0.b32.cont [2/16] 0.0, 128
    %308 = vxpose.xlu0.b32.cont [3/16] 0.0, 128
    %309 = vxpose.xlu0.b32.cont [4/16] 0.0, 128
    %310 = vxpose.xlu0.b32.cont [5/16] 0.0, 128
    %311 = vxpose.xlu0.b32.cont [6/16] 0.0, 128
    %312 = vxpose.xlu0.b32.cont [7/16] 0.0, 128
    %313 = vxpose.xlu0.b32.cont [8/16] 0.0, 128
    %314 = vxpose.xlu0.b32.cont [9/16] 0.0, 128
    %315 = vxpose.xlu0.b32.cont [10/16] 0.0, 128
    %316 = vxpose.xlu0.b32.cont [11/16] 0.0, 128
    %317 = vxpose.xlu0.b32.cont [12/16] 0.0, 128
    %318 = vxpose.xlu0.b32.cont [13/16] 0.0, 128
    %319 = vxpose.xlu0.b32.cont [14/16] 0.0, 128
    %320 = vxpose.xlu0.b32.cont [15/16] 0.0, 128
    %321 = vxpose.xlu0.b32.end [16/16] 0.0, 128
    %v322 = vpop.trf.xlu0
    %v323 = vpop.trf.xlu0
    %v324 = vpop.trf.xlu0
    %v325 = vpop.trf.xlu0
    %v326 = vpop.trf.xlu0
    %v327 = vpop.trf.xlu0
    %v328 = vpop.trf.xlu0
    %v329 = vpop.trf.xlu0
    %v330 = vpop.trf.xlu0
    %v331 = vpop.trf.xlu0
    %v332 = vpop.trf.xlu0
    %v333 = vpop.trf.xlu0
    %v334 = vpop.trf.xlu0
    %v335 = vpop.trf.xlu0
    %v336 = vpop.trf.xlu0
    %v337 = vpop.trf.xlu0
    %338 = vxpose.xlu0.b32.start [1/16] %v192, 128
    %339 = vxpose.xlu0.b32.cont [2/16] 0.0, 128
    %340 = vxpose.xlu0.b32.cont [3/16] 0.0, 128
    %341 = vxpose.xlu0.b32.cont [4/16] 0.0, 128
    %342 = vxpose.xlu0.b32.cont [5/16] 0.0, 128
    %343 = vxpose.xlu0.b32.cont [6/16] 0.0, 128
    %344 = vxpose.xlu0.b32.cont [7/16] 0.0, 128
    %345 = vxpose.xlu0.b32.cont [8/16] 0.0, 128
    %346 = vxpose.xlu0.b32.cont [9/16] 0.0, 128
    %347 = vxpose.xlu0.b32.cont [10/16] 0.0, 128
    %348 = vxpose.xlu0.b32.cont [11/16] 0.0, 128
    %349 = vxpose.xlu0.b32.cont [12/16] 0.0, 128
    %350 = vxpose.xlu0.b32.cont [13/16] 0.0, 128
    %351 = vxpose.xlu0.b32.cont [14/16] 0.0, 128
    %352 = vxpose.xlu0.b32.cont [15/16] 0.0, 128
    %353 = vxpose.xlu0.b32.end [16/16] 0.0, 128
    %v354 = vpop.trf.xlu0
    %v355 = vpop.trf.xlu0
    %v356 = vpop.trf.xlu0
    %v357 = vpop.trf.xlu0
    %v358 = vpop.trf.xlu0
    %v359 = vpop.trf.xlu0
    %v360 = vpop.trf.xlu0
    %v361 = vpop.trf.xlu0
    %v362 = vpop.trf.xlu0
    %v363 = vpop.trf.xlu0
    %v364 = vpop.trf.xlu0
    %v365 = vpop.trf.xlu0
    %v366 = vpop.trf.xlu0
    %v367 = vpop.trf.xlu0
    %v368 = vpop.trf.xlu0
    %v369 = vpop.trf.xlu0
    %370 = vxpose.xlu0.b32.start [1/16] %v197, 128
    %371 = vxpose.xlu0.b32.cont [2/16] 0.0, 128
    %372 = vxpose.xlu0.b32.cont [3/16] 0.0, 128
    %373 = vxpose.xlu0.b32.cont [4/16] 0.0, 128
    %374 = vxpose.xlu0.b32.cont [5/16] 0.0, 128
    %375 = vxpose.xlu0.b32.cont [6/16] 0.0, 128
    %376 = vxpose.xlu0.b32.cont [7/16] 0.0, 128
    %377 = vxpose.xlu0.b32.cont [8/16] 0.0, 128
    %378 = vxpose.xlu0.b32.cont [9/16] 0.0, 128
    %379 = vxpose.xlu0.b32.cont [10/16] 0.0, 128
    %380 = vxpose.xlu0.b32.cont [11/16] 0.0, 128
    %381 = vxpose.xlu0.b32.cont [12/16] 0.0, 128
    %382 = vxpose.xlu0.b32.cont [13/16] 0.0, 128
    %383 = vxpose.xlu0.b32.cont [14/16] 0.0, 128
    %384 = vxpose.xlu0.b32.cont [15/16] 0.0, 128
    %385 = vxpose.xlu0.b32.end [16/16] 0.0, 128
    %v386 = vpop.trf.xlu0
    %v387 = vpop.trf.xlu0
    %v388 = vpop.trf.xlu0
    %v389 = vpop.trf.xlu0
    %v390 = vpop.trf.xlu0
    %v391 = vpop.trf.xlu0
    %v392 = vpop.trf.xlu0
    %v393 = vpop.trf.xlu0
    %v394 = vpop.trf.xlu0
    %v395 = vpop.trf.xlu0
    %v396 = vpop.trf.xlu0
    %v397 = vpop.trf.xlu0
    %v398 = vpop.trf.xlu0
    %v399 = vpop.trf.xlu0
    %v400 = vpop.trf.xlu0
    %v401 = vpop.trf.xlu0
    %402 = vxpose.xlu0.b32.start [1/16] %v202, 128
    %403 = vxpose.xlu0.b32.cont [2/16] 0.0, 128
    %404 = vxpose.xlu0.b32.cont [3/16] 0.0, 128
    %405 = vxpose.xlu0.b32.cont [4/16] 0.0, 128
    %406 = vxpose.xlu0.b32.cont [5/16] 0.0, 128
    %407 = vxpose.xlu0.b32.cont [6/16] 0.0, 128
    %408 = vxpose.xlu0.b32.cont [7/16] 0.0, 128
    %409 = vxpose.xlu0.b32.cont [8/16] 0.0, 128
    %410 = vxpose.xlu0.b32.cont [9/16] 0.0, 128
    %411 = vxpose.xlu0.b32.cont [10/16] 0.0, 128
    %412 = vxpose.xlu0.b32.cont [11/16] 0.0, 128
    %413 = vxpose.xlu0.b32.cont [12/16] 0.0, 128
    %414 = vxpose.xlu0.b32.cont [13/16] 0.0, 128
    %415 = vxpose.xlu0.b32.cont [14/16] 0.0, 128
    %416 = vxpose.xlu0.b32.cont [15/16] 0.0, 128
    %417 = vxpose.xlu0.b32.end [16/16] 0.0, 128
    %v418 = vpop.trf.xlu0
    %v419 = vpop.trf.xlu0
    %v420 = vpop.trf.xlu0
    %v421 = vpop.trf.xlu0
    %v422 = vpop.trf.xlu0
    %v423 = vpop.trf.xlu0
    %v424 = vpop.trf.xlu0
    %v425 = vpop.trf.xlu0
    %v426 = vpop.trf.xlu0
    %v427 = vpop.trf.xlu0
    %v428 = vpop.trf.xlu0
    %v429 = vpop.trf.xlu0
    %v430 = vpop.trf.xlu0
    %v431 = vpop.trf.xlu0
    %v432 = vpop.trf.xlu0
    %v433 = vpop.trf.xlu0
    %434 = vxpose.xlu0.b32.start [1/16] %v207, 128
    %435 = vxpose.xlu0.b32.cont [2/16] 0.0, 128
    %436 = vxpose.xlu0.b32.cont [3/16] 0.0, 128
    %437 = vxpose.xlu0.b32.cont [4/16] 0.0, 128
    %438 = vxpose.xlu0.b32.cont [5/16] 0.0, 128
    %439 = vxpose.xlu0.b32.cont [6/16] 0.0, 128
    %440 = vxpose.xlu0.b32.cont [7/16] 0.0, 128
    %441 = vxpose.xlu0.b32.cont [8/16] 0.0, 128
    %442 = vxpose.xlu0.b32.cont [9/16] 0.0, 128
    %443 = vxpose.xlu0.b32.cont [10/16] 0.0, 128
    %444 = vxpose.xlu0.b32.cont [11/16] 0.0, 128
    %445 = vxpose.xlu0.b32.cont [12/16] 0.0, 128
    %446 = vxpose.xlu0.b32.cont [13/16] 0.0, 128
    %447 = vxpose.xlu0.b32.cont [14/16] 0.0, 128
    %448 = vxpose.xlu0.b32.cont [15/16] 0.0, 128
    %449 = vxpose.xlu0.b32.end [16/16] 0.0, 128
    %v450 = vpop.trf.xlu0
    %v451 = vpop.trf.xlu0
    %v452 = vpop.trf.xlu0
    %v453 = vpop.trf.xlu0
    %v454 = vpop.trf.xlu0
    %v455 = vpop.trf.xlu0
    %v456 = vpop.trf.xlu0
    %v457 = vpop.trf.xlu0
    %v458 = vpop.trf.xlu0
    %v459 = vpop.trf.xlu0
    %v460 = vpop.trf.xlu0
    %v461 = vpop.trf.xlu0
    %v462 = vpop.trf.xlu0
    %v463 = vpop.trf.xlu0
    %v464 = vpop.trf.xlu0
    %v465 = vpop.trf.xlu0
    %vm474 = vcmask 1046528
    %v475 = vrot.slane %v226, 1
    %v476 = vrot.slane %v258, 1
    %v477 = vsel %vm474, %v475, %v476
    %v478 = vrot.slane %v290, 1
    %v479 = vsel %vm474, %v476, %v478
    %v480 = vrot.slane %v322, 1
    %v481 = vsel %vm474, %v478, %v480
    %v482 = vrot.slane %v354, 1
    %v483 = vsel %vm474, %v480, %v482
    %v484 = vrot.slane %v386, 1
    %v485 = vsel %vm474, %v482, %v484
    %v486 = vrot.slane %v418, 1
    %v487 = vsel %vm474, %v484, %v486
    %v488 = vrot.slane %v450, 1
    %v489 = vsel %vm474, %v486, %v488
    %v492 = vsel %vm474, %v488, %v475
    %494 = vrot.lane.b32.xlu0 %v477, 8
    %v495 = vpop.permute.xlu0 %494
    %496 = vrot.lane.b32.xlu0 %v479, 8
    %v497 = vpop.permute.xlu0 %496
    %498 = vrot.lane.b32.xlu0 %v481, 8
    %v499 = vpop.permute.xlu0 %498
    %500 = vrot.lane.b32.xlu0 %v483, 8
    %v501 = vpop.permute.xlu0 %500
    %502 = vrot.lane.b32.xlu0 %v485, 8
    %v503 = vpop.permute.xlu0 %502
    %504 = vrot.lane.b32.xlu0 %v487, 8
    %v505 = vpop.permute.xlu0 %504
    %506 = vrot.lane.b32.xlu0 %v489, 8
    %v507 = vpop.permute.xlu0 %506
    %508 = vrot.lane.b32.xlu0 %v492, 8
    %v509 = vpop.permute.xlu0 %508
    %vm518 = vcmask 64512
    %v519 = vsel %vm518, %v226, %v495
    %v520 = vsel %vm518, %v258, %v497
    %v521 = vsel %vm518, %v290, %v499
    %v522 = vsel %vm518, %v322, %v501
    %v523 = vsel %vm518, %v354, %v503
    %v524 = vsel %vm518, %v386, %v505
    %v525 = vsel %vm518, %v418, %v507
    %v526 = vsel %vm518, %v450, %v509
    %v527 = vld [vmem:[%s2] sm:$0xff]
    %v528 = vld [vmem:[%s2 + $0x8] sm:$0xff]
    %vm529 = vcmask 130048
    %v531 = vsel %vm529, %v519, 0
    %v534 = vsel %vm529, %v520, 0
    %v537 = vsel %vm529, %v521, 0
    %v540 = vsel %vm529, %v522, 0
    %v543 = vsel %vm529, %v523, 0
    %v546 = vsel %vm529, %v524, 0
    %v549 = vsel %vm529, %v525, 0
    %v552 = vsel %vm529, %v526, 0
    %554 = vmatprep.subr.mxu0 0.0
    %555 = vmatpush1.msra.mxu0 %v527
    %556 = vmatprep.subr.mxu0 0.0
    %557 = vmatpush1.msra.mxu0 %v528
    %558 = vmatprep.subr.mxu0 0.0
    %559 = vmatpush1.msra.mxu0 0.0
    %560 = vmatprep.subr.mxu0 0.0
    %561 = vmatpush1.msra.mxu0 0.0
    %562 = vmatprep.subr.mxu0 0.0
    %563 = vmatpush1.msra.mxu0 0.0
    %564 = vmatprep.subr.mxu0 0.0
    %565 = vmatpush1.msra.mxu0 0.0
    %566 = vmatprep.subr.mxu0 0.0
    %567 = vmatpush1.msra.mxu0 0.0
    %568 = vmatprep.subr.mxu0 0.0
    %569 = vmatpush1.msra.mxu0 0.0
    %570 = vmatprep.subr.mxu0 0.0
    %571 = vmatpush1.msra.mxu0 0.0
    %572 = vmatprep.subr.mxu0 0.0
    %573 = vmatpush1.msra.mxu0 0.0
    %574 = vmatprep.subr.mxu0 0.0
    %575 = vmatpush1.msra.mxu0 0.0
    %576 = vmatprep.subr.mxu0 0.0
    %577 = vmatpush1.msra.mxu0 0.0
    %578 = vmatprep.subr.mxu0 0.0
    %579 = vmatpush1.msra.mxu0 0.0
    %580 = vmatprep.subr.mxu0 0.0
    %581 = vmatpush1.msra.mxu0 0.0
    %582 = vmatprep.subr.mxu0 0.0
    %583 = vmatpush1.msra.mxu0 0.0
    %584 = vmatprep.subr.mxu0 0.0
    %585 = vmatpush1.msra.mxu0 0.0
    %586 = vmatprep.subr.mxu0 0.0
    %587 = vmatpush1.msra.mxu0 0.0
    %588 = vmatprep.subr.mxu0 0.0
    %589 = vmatpush1.msra.mxu0 0.0
    %590 = vmatprep.subr.mxu0 0.0
    %591 = vmatpush1.msra.mxu0 0.0
    %592 = vmatprep.subr.mxu0 0.0
    %593 = vmatpush1.msra.mxu0 0.0
    %594 = vmatprep.subr.mxu0 0.0
    %595 = vmatpush1.msra.mxu0 0.0
    %596 = vmatprep.subr.mxu0 0.0
    %597 = vmatpush1.msra.mxu0 0.0
    %598 = vmatprep.subr.mxu0 0.0
    %599 = vmatpush1.msra.mxu0 0.0
    %600 = vmatprep.subr.mxu0 0.0
    %601 = vmatpush1.msra.mxu0 0.0
    %602 = vmatprep.subr.mxu0 0.0
    %603 = vmatpush1.msra.mxu0 0.0
    %604 = vmatprep.subr.mxu0 0.0
    %605 = vmatpush1.msra.mxu0 0.0
    %606 = vmatprep.subr.mxu0 0.0
    %607 = vmatpush1.msra.mxu0 0.0
    %608 = vmatprep.subr.mxu0 0.0
    %609 = vmatpush1.msra.mxu0 0.0
    %610 = vmatprep.subr.mxu0 0.0
    %611 = vmatpush1.msra.mxu0 0.0
    %612 = vmatprep.subr.mxu0 0.0
    %613 = vmatpush1.msra.mxu0 0.0
    %614 = vmatprep.subr.mxu0 0.0
    %615 = vmatpush1.msra.mxu0 0.0
    %616 = vmatprep.subr.mxu0 0.0
    %617 = vmatpush1.msra.mxu0 0.0
    %618 = vmatprep.mubr.f32.mxu0 0.0
    %619 = vmatmul.mubr.f32.gmra.mrb[0].mxu0 %v531
    %v620 = vpop.f32.mrb[0].mxu0
    %v621 = vadd.f32 0.0, %v620
    %v622 = vpop.f32.mrb[0].mxu0
    %623 = vmatprep.mubr.f32.mxu0 0.0
    %624 = vmatmul.mubr.f32.gmra.mrb[0].mxu0 %v534
    %v625 = vpop.f32.mrb[0].mxu0
    %v626 = vadd.f32 0.0, %v625
    %v627 = vpop.f32.mrb[0].mxu0
    %628 = vmatprep.mubr.f32.mxu0 0.0
    %629 = vmatmul.mubr.f32.gmra.mrb[0].mxu0 %v537
    %v630 = vpop.f32.mrb[0].mxu0
    %v631 = vadd.f32 0.0, %v630
    %v632 = vpop.f32.mrb[0].mxu0
    %633 = vmatprep.mubr.f32.mxu0 0.0
    %634 = vmatmul.mubr.f32.gmra.mrb[0].mxu0 %v540
    %v635 = vpop.f32.mrb[0].mxu0
    %v636 = vadd.f32 0.0, %v635
    %v637 = vpop.f32.mrb[0].mxu0
    %638 = vmatprep.mubr.f32.mxu0 0.0
    %639 = vmatmul.mubr.f32.gmra.mrb[0].mxu0 %v543
    %v640 = vpop.f32.mrb[0].mxu0
    %v641 = vadd.f32 0.0, %v640
    %v642 = vpop.f32.mrb[0].mxu0
    %643 = vmatprep.mubr.f32.mxu0 0.0
    %644 = vmatmul.mubr.f32.gmra.mrb[0].mxu0 %v546
    %v645 = vpop.f32.mrb[0].mxu0
    %v646 = vadd.f32 0.0, %v645
    %v647 = vpop.f32.mrb[0].mxu0
    %648 = vmatprep.mubr.f32.mxu0 0.0
    %649 = vmatmul.mubr.f32.gmra.mrb[0].mxu0 %v549
    %v650 = vpop.f32.mrb[0].mxu0
    %v651 = vadd.f32 0.0, %v650
    %v652 = vpop.f32.mrb[0].mxu0
    %653 = vmatprep.mubr.f32.mxu0 0.0
    %654 = vmatmul.mubr.f32.gmra.mrb[0].mxu0 %v552
    %v655 = vpop.f32.mrb[0].mxu0
    %v656 = vadd.f32 0.0, %v655
    %v657 = vpop.f32.mrb[0].mxu0
    %658 = vdwg.mxu0
    %v659 = vlaneseq
    %v660 = vshrl.u32 %v659, 7
    %vm661 = vcmp.lt.s32.totalorder %v660, 7
    %v662 = vsel %vm661, %v621, -inf
    %v663 = vsel %vm661, %v626, -inf
    %v664 = vsel %vm661, %v631, -inf
    %v665 = vsel %vm661, %v636, -inf
    %v666 = vsel %vm661, %v641, -inf
    %v667 = vsel %vm661, %v646, -inf
    %v668 = vsel %vm661, %v651, -inf
    %v669 = vsel %vm661, %v656, -inf
    %vm670 = vcmask 523264
    %v671 = vsel %vm670, %v662, -inf
    %v672 = vrot.slane %v671, 4
    %v673 = vmax.f32 %v671, %v672
    %v674 = vrot.slane %v673, 2
    %v675 = vmax.f32 %v673, %v674
    %v676 = vrot.slane %v675, 1
    %v677 = vmax.f32 %v675, %v676
    %v678 = vsel %vm670, %v663, -inf
    %v679 = vrot.slane %v678, 4
    %v680 = vmax.f32 %v678, %v679
    %v681 = vrot.slane %v680, 2
    %v682 = vmax.f32 %v680, %v681
    %v683 = vrot.slane %v682, 1
    %v684 = vmax.f32 %v682, %v683
    %v685 = vsel %vm670, %v664, -inf
    %v686 = vrot.slane %v685, 4
    %v687 = vmax.f32 %v685, %v686
    %v688 = vrot.slane %v687, 2
    %v689 = vmax.f32 %v687, %v688
    %v690 = vrot.slane %v689, 1
    %v691 = vmax.f32 %v689, %v690
    %v692 = vsel %vm670, %v665, -inf
    %v693 = vrot.slane %v692, 4
    %v694 = vmax.f32 %v692, %v693
    %v695 = vrot.slane %v694, 2
    %v696 = vmax.f32 %v694, %v695
    %v697 = vrot.slane %v696, 1
    %v698 = vmax.f32 %v696, %v697
    %v699 = vsel %vm670, %v666, -inf
    %v700 = vrot.slane %v699, 4
    %v701 = vmax.f32 %v699, %v700
    %v702 = vrot.slane %v701, 2
    %v703 = vmax.f32 %v701, %v702
    %v704 = vrot.slane %v703, 1
    %v705 = vmax.f32 %v703, %v704
    %v706 = vsel %vm670, %v667, -inf
    %v707 = vrot.slane %v706, 4
    %v708 = vmax.f32 %v706, %v707
    %v709 = vrot.slane %v708, 2
    %v710 = vmax.f32 %v708, %v709
    %v711 = vrot.slane %v710, 1
    %v712 = vmax.f32 %v710, %v711
    %v713 = vsel %vm670, %v668, -inf
    %v714 = vrot.slane %v713, 4
    %v715 = vmax.f32 %v713, %v714
    %v716 = vrot.slane %v715, 2
    %v717 = vmax.f32 %v715, %v716
    %v718 = vrot.slane %v717, 1
    %v719 = vmax.f32 %v717, %v718
    %v720 = vsel %vm670, %v669, -inf
    %v721 = vrot.slane %v720, 4
    %v722 = vmax.f32 %v720, %v721
    %v723 = vrot.slane %v722, 2
    %v724 = vmax.f32 %v722, %v723
    %v725 = vrot.slane %v724, 1
    %v726 = vmax.f32 %v724, %v725
    %v727 = vld [vmem:[%s3] sm:$0x1]
    %v729 = vlaneseq
    %v730 = vshrl.u32 %v729, 7
    %v731 = vsub.s32 0, %v730
    %v732 = vrot.slane %v727, %v731
    %v734 = vadd.f32 %v677, %v732
    %v735 = vadd.f32 %v684, %v732
    %v736 = vadd.f32 %v691, %v732
    %v737 = vadd.f32 %v698, %v732
    %v738 = vadd.f32 %v705, %v732
    %v739 = vadd.f32 %v712, %v732
    %v740 = vadd.f32 %v719, %v732
    %v741 = vadd.f32 %v726, %v732
    %v750 = vrot.slane %v735, 7
    %vm751 = vcmask 1041409
    %v752 = vsel %vm751, %v750, %v734
    %v753 = vrot.slane %v736, 6
    %vm754 = vcmask 1042434
    %v755 = vsel %vm754, %v753, %v752
    %v756 = vrot.slane %v737, 5
    %vm757 = vcmask 1043459
    %v758 = vsel %vm757, %v756, %v755
    %v759 = vrot.slane %v738, 4
    %vm760 = vcmask 1044484
    %v761 = vsel %vm760, %v759, %v758
    %v762 = vrot.slane %v739, 3
    %vm763 = vcmask 1045509
    %v764 = vsel %vm763, %v762, %v761
    %v765 = vrot.slane %v740, 2
    %vm766 = vcmask 1046534
    %v767 = vsel %vm766, %v765, %v764
    %v768 = vrot.slane %v741, 1
    %vm769 = vcmask 1047559
    %v770 = vsel %vm769, %v768, %v767
    %772 = vst.msk [vmem:[#allocation2] sm:$0xff] %vm670, %v770
    // Predicated region
    $region18: #{tpu_custom_call.1} parent=1 // pred_check
      _
    $region19: #{tpu_custom_call.1} parent=1 // pred_check_branch
      %774 = sbr.rel (0) target = $region21
    $region20: #{tpu_custom_call.1} parent=1 // pred_region
      %s776 = ssub.s32 128, 128
      %777 = vsyncadd [#allocation3], %s776
      %s779 = sshll.u32 [#allocation2], 4
      %s780 = int_to_ptr.vmem [resolvable:$true] %s779
      %782 = dma.vmem_to_hbm [thread:$0]  %s780, 128, %s4, [#allocation3]
    $region21: #{tpu_custom_call.1} parent=1 // pred_fallthru
      _
    // Predicated region
    $region22: #{tpu_custom_call.1} parent=1 // pred_check
      _
    $region23: #{tpu_custom_call.1} parent=1 // pred_check_branch
      %784 = sbr.rel (0) target = $region25
    $region24: #{tpu_custom_call.1} parent=1 // pred_region
      %785 = dma.done [#allocation3], 128
    $region25: #{tpu_custom_call.1} parent=1 // pred_fallthru
      _
    %786 = vsyncpa [#allocation3], 1

</llo_original>
